<compile_context>
chip_gen: v7x
topology: tpu7x:2x2x1
jax: 0.10.0
libtpu: 0.0.40
codegen_flags: <defaults>
</compile_context>

<pallas_src>
import functools

import jax
import jax.numpy as jnp
from jax.experimental import pallas as pl
from jax.experimental.pallas import tpu as pltpu


def _round_up(x, m):
    return ((x + m - 1) // m) * m


def _linear_kernel(x_ref, wt_ref, b_ref, o_ref, acc_ref):
    # x_ref:  [tm, tk]   samples tile
    # wt_ref: [tk, tn]   (pre-transposed, mapped, padded) weight tile
    # b_ref:  [1,  tn]   (mapped, padded) f32 bias tile
    # o_ref:  [tm, tn]   output tile
    # acc_ref:[tm, tn]   f32 accumulator scratch (persists across k)
    k = pl.program_id(2)

    @pl.when(k == 0)
    def _():
        # Fold the bias add into the accumulator init.
        acc_ref[...] = jnp.broadcast_to(b_ref[...], acc_ref.shape)

    acc_ref[...] += jnp.dot(x_ref[...], wt_ref[...],
                            preferred_element_type=jnp.float32)

    @pl.when(k == pl.num_programs(2) - 1)
    def _():
        o_ref[...] = acc_ref[...].astype(o_ref.dtype)


@functools.partial(jax.jit, static_argnames=("tm", "tn", "tk"))
def _pallas_linear_padded(x, wt, b2, *, tm, tn, tk):
    """x: [Bp, Dp], wt: [Dp, Cp], b2: [1, Cp] (f32); all dims tile-aligned."""
    Bp, Dp = x.shape
    _, Cp = wt.shape
    grid = (Bp // tm, Cp // tn, Dp // tk)
    itemsize = jnp.dtype(x.dtype).itemsize
    cost = pl.CostEstimate(
        flops=2 * Bp * Dp * Cp,
        transcendentals=0,
        bytes_accessed=(Bp * Dp + Dp * Cp) * itemsize + Bp * Cp * itemsize,
    )
    return pl.pallas_call(
        _linear_kernel,
        out_shape=jax.ShapeDtypeStruct((Bp, Cp), x.dtype),
        grid_spec=pltpu.PrefetchScalarGridSpec(
            num_scalar_prefetch=0,
            grid=grid,
            in_specs=[
                pl.BlockSpec((tm, tk), lambda i, j, k: (i, k)),
                pl.BlockSpec((tk, tn), lambda i, j, k: (k, j)),
                pl.BlockSpec((1, tn), lambda i, j, k: (0, j)),
            ],
            out_specs=pl.BlockSpec((tm, tn), lambda i, j, k: (i, j)),
            scratch_shapes=[pltpu.VMEM((tm, tn), jnp.float32)],
        ),
        compiler_params=pltpu.CompilerParams(
            dimension_semantics=("parallel", "parallel", "arbitrary"),
            vmem_limit_bytes=64 * 1024 * 1024,
        ),
        cost_estimate=cost,
    )(x, wt, b2)


class LinearPostprocessor:
    """JAX/Pallas re-implementation of Harmony's LinearPostprocessor.

    weight: [C, D] (PyTorch nn.Linear layout), bias: [C] or None.
    If class_mapping is given, it is fused into the weight/bias at init time
    ((x @ W.T + b)[:, mapping] == x @ W[mapping].T + b[mapping]), so the
    kernel only computes the C' = len(mapping) columns that are returned.
    """

    def __init__(self, weight, bias=None, class_mapping=None,
                 tm=256, tn=256, tk=512, compute_dtype=None):
        weight = jnp.asarray(weight)
        if bias is None:
            bias = jnp.zeros((weight.shape[0],), dtype=jnp.float32)
        bias = jnp.asarray(bias)
        if class_mapping is not None:
            cm = jnp.asarray(class_mapping, dtype=jnp.int32)
            weight = weight[cm]          # [C', D]
            bias = bias[cm]              # [C']
        if compute_dtype is not None:
            # Optional bf16 path for the MXU; f32 accumulation is kept in the
            # kernel and the bias stays in f32 (folded into the accumulator).
            weight = weight.astype(compute_dtype)
        self.compute_dtype = compute_dtype

        C, D = weight.shape
        self.C, self.D = C, D

        # Tile sizes / padded dims (done once, not per call).
        Cp = _round_up(C, 128)
        Dp = _round_up(D, 128)
        self.tn = min(tn, Cp)
        self.tk = min(tk, Dp)
        self.Cp = _round_up(Cp, self.tn)
        self.Dp = _round_up(Dp, self.tk)
        self.tm = tm

        # Pre-pad + pre-transpose the weight once: [Dp, Cp].
        w_pad = jnp.pad(weight, ((0, self.Cp - C), (0, self.Dp - D)))
        self.wt = jnp.asarray(w_pad.T)                                  # [Dp, Cp]
        self.b2 = jnp.pad(bias.astype(jnp.float32),
                          (0, self.Cp - C)).reshape(1, self.Cp)          # [1, Cp] f32

    def __call__(self, samples, targets):
        samples = jnp.asarray(samples)
        if self.compute_dtype is not None:
            samples = samples.astype(self.compute_dtype)
        B, D = samples.shape
        assert D == self.D, f"feature dim mismatch: {D} vs {self.D}"

        Bp = _round_up(B, 8)
        tm = min(self.tm, Bp)
        Bp = _round_up(Bp, tm)
        if Bp != B or self.Dp != D:
            x = jnp.pad(samples, ((0, Bp - B), (0, self.Dp - D)))
        else:
            x = samples

        out = _pallas_linear_padded(x, self.wt, self.b2,
                                    tm=tm, tn=self.tn, tk=self.tk)
        preds = out[:B, :self.C]
        return {"preds": preds, "target": targets}


if __name__ == "__main__":
    key = jax.random.PRNGKey(0)
    k_x, k_w, k_b, k_t = jax.random.split(key, 4)

    B, D, C = 8, 32, 16                  # batch, feature dim, num classes
    samples = jax.random.normal(k_x, (B, D), dtype=jnp.float32)
    targets = jax.random.randint(k_t, (B,), 0, C, dtype=jnp.int32)

    # Deterministic synthetic parameters (nn.Linear(D, C) shapes).
    weight = jax.random.normal(k_w, (C, D), dtype=jnp.float32) * 0.02
    bias = jax.random.normal(k_b, (C,), dtype=jnp.float32) * 0.01

    class_mapping = jnp.array([3, 0, 7, 12, 5, 9], dtype=jnp.int32)

    # --- with class mapping (fused into weight/bias at init) ---
    model = LinearPostprocessor(weight, bias, class_mapping=class_mapping)
    out = model(samples, targets)
    jax.block_until_ready(out["preds"])
    jax.block_until_ready(out["target"])

    ref = (samples @ weight.T + bias)[:, class_mapping]
    assert out["preds"].shape == (B, class_mapping.shape[0])
    assert jnp.allclose(out["preds"], ref, atol=1e-5, rtol=1e-5)
    assert jnp.array_equal(out["target"], targets)

    # --- without class mapping ---
    model_full = LinearPostprocessor(weight, bias, class_mapping=None)
    out_full = model_full(samples, targets)
    jax.block_until_ready(out_full["preds"])
    ref_full = samples @ weight.T + bias
    assert out_full["preds"].shape == (B, C)
    assert jnp.allclose(out_full["preds"], ref_full, atol=1e-5, rtol=1e-5)

    print("KERNEL_OK")
</pallas_src>

<mosaic_0001>
module attributes {stable_mosaic.version = 11 : i64} {
  func.func @_linear_kernel(%arg0: i32, %arg1: i32, %arg2: i32, %arg3: memref<8x128xf32, #tpu.memory_space<vmem>>, %arg4: memref<128x128xf32, #tpu.memory_space<vmem>>, %arg5: memref<1x128xf32, #tpu.memory_space<vmem>>, %arg6: memref<8x128xf32, #tpu.memory_space<vmem>>, %arg7: memref<8x128xf32, #tpu.memory_space<vmem>>) attributes {dimension_semantics = [#tpu.dimension_semantics<parallel>, #tpu.dimension_semantics<parallel>, #tpu.dimension_semantics<arbitrary>], iteration_bounds = array<i64: 1, 1, 1>, scalar_prefetch = 0 : i64, scratch_operands = 1 : i64, tpu.core_type = #tpu.core_type<tc>, window_params = [{transform_indices = @transform_0, window_bounds = array<i64: 8, 128>}, {transform_indices = @transform_1, window_bounds = array<i64: 128, 128>}, {transform_indices = @transform_2, window_bounds = array<i64: 1, 128>}, {transform_indices = @transform_3, window_bounds = array<i64: 8, 128>}]} {
    %c0_i32 = arith.constant 0 : i32
    %0 = arith.cmpi eq, %arg2, %c0_i32 : i32
    %1 = arith.extui %0 : i1 to i32
    %c0_i32_0 = arith.constant 0 : i32
    %2 = arith.cmpi ne, %1, %c0_i32_0 : i32
    scf.if %2 {
      %c0_10 = arith.constant 0 : index
      %c0_11 = arith.constant 0 : index
      %12 = vector.load %arg5[%c0_10, %c0_11] : memref<1x128xf32, #tpu.memory_space<vmem>>, vector<1x128xf32>
      %13 = vector.shape_cast %12 : vector<1x128xf32> to vector<1x128xf32>
      %14 = vector.broadcast %13 : vector<1x128xf32> to vector<8x128xf32>
      %c0_12 = arith.constant 0 : index
      %c0_13 = arith.constant 0 : index
      %15 = vector.load %arg7[%c0_12, %c0_13] : memref<8x128xf32, #tpu.memory_space<vmem>>, vector<8x128xf32>
      tpu.vector_store %arg7[%c0_12, %c0_13], %14 {strides = array<i32>} : memref<8x128xf32, #tpu.memory_space<vmem>>, vector<8x128xf32>,
    } else {
    }
    %c0 = arith.constant 0 : index
    %c0_1 = arith.constant 0 : index
    %3 = vector.load %arg7[%c0, %c0_1] : memref<8x128xf32, #tpu.memory_space<vmem>>, vector<8x128xf32>
    %c0_2 = arith.constant 0 : index
    %c0_3 = arith.constant 0 : index
    %4 = vector.load %arg3[%c0_2, %c0_3] : memref<8x128xf32, #tpu.memory_space<vmem>>, vector<8x128xf32>
    %c0_4 = arith.constant 0 : index
    %c0_5 = arith.constant 0 : index
    %5 = vector.load %arg4[%c0_4, %c0_5] : memref<128x128xf32, #tpu.memory_space<vmem>>, vector<128x128xf32>
    %cst = arith.constant dense<0.000000e+00> : vector<8x128xf32>
    %6 = tpu.matmul %4, %5, %cst {dimension_numbers = #tpu.dot_dimension_numbers<[1], [0], [0], [1], [0, 0, 1, 1], [], []>} : vector<8x128xf32>, vector<128x128xf32>, vector<8x128xf32> -> vector<8x128xf32>
    %7 = arith.addf %3, %6 : vector<8x128xf32>
    %c0_6 = arith.constant 0 : index
    %c0_7 = arith.constant 0 : index
    %8 = vector.load %arg7[%c0_6, %c0_7] : memref<8x128xf32, #tpu.memory_space<vmem>>, vector<8x128xf32>
    tpu.vector_store %arg7[%c0_6, %c0_7], %7 {strides = array<i32>} : memref<8x128xf32, #tpu.memory_space<vmem>>, vector<8x128xf32>,
    %c0_i32_8 = arith.constant 0 : i32
    %9 = arith.cmpi eq, %arg2, %c0_i32_8 : i32
    %10 = arith.extui %9 : i1 to i32
    %c0_i32_9 = arith.constant 0 : i32
    %11 = arith.cmpi ne, %10, %c0_i32_9 : i32
    scf.if %11 {
      %c0_10 = arith.constant 0 : index
      %c0_11 = arith.constant 0 : index
      %12 = vector.load %arg7[%c0_10, %c0_11] : memref<8x128xf32, #tpu.memory_space<vmem>>, vector<8x128xf32>
      %c0_12 = arith.constant 0 : index
      %c0_13 = arith.constant 0 : index
      %13 = vector.load %arg6[%c0_12, %c0_13] : memref<8x128xf32, #tpu.memory_space<vmem>>, vector<8x128xf32>
      tpu.vector_store %arg6[%c0_12, %c0_13], %12 {strides = array<i32>} : memref<8x128xf32, #tpu.memory_space<vmem>>, vector<8x128xf32>,
    } else {
    }
    return
  }
  func.func @transform_0(%arg0: i32, %arg1: i32, %arg2: i32) -> (i32, i32) {
    %c0_i32 = arith.constant 0 : i32
    return %arg0, %arg2 : i32, i32
  }
  func.func @transform_1(%arg0: i32, %arg1: i32, %arg2: i32) -> (i32, i32) {
    %c0_i32 = arith.constant 0 : i32
    return %arg2, %arg1 : i32, i32
  }
  func.func @transform_2(%arg0: i32, %arg1: i32, %arg2: i32) -> (i32, i32) {
    %c0_i32 = arith.constant 0 : i32
    %c0_i32_0 = arith.constant 0 : i32
    return %c0_i32, %arg1 : i32, i32
  }
  func.func @transform_3(%arg0: i32, %arg1: i32, %arg2: i32) -> (i32, i32) {
    %c0_i32 = arith.constant 0 : i32
    return %arg0, %arg1 : i32, i32
  }
}

</mosaic_0001>

<llo_original>
// kernel: _pallas_linear_padded.1
$region0: #{_pallas_linear_padded.1}
  #allocation0 [shape = 'u32[]', space=smem, size = 0x4, offset = 0x4, fixed_abs, tag = 'smem constant byte address 0x4 - core index']
  #allocation1 [shape = 'u32[144,128]{1,0:T(1,128)}', space=vmem, size = 0x12000, scoped, tag = 'internal scratch']
  #allocation2 [shape = 'f32[8,128]{1,0:T(8,128)}', space=vmem, size = 0x1000, scoped, tag = 'scratch operand']
  %s0 = inlined_call_operand.hbm [shape: f32[8,128], index: 0, kind: input, shape index: {}]
  %s1 = inlined_call_operand.hbm [shape: f32[128,128], index: 1, kind: input, shape index: {}]
  %s2 = inlined_call_operand.hbm [shape: f32[1,128], index: 2, kind: input, shape index: {}]
  %s3 = inlined_call_operand.hbm [shape: f32[8,128], index: 3, kind: output, shape index: {}]
  %s4 = sld [smem:[#allocation0]]
  $region42: #{_pallas_linear_padded.1} parent=0
    _
  %s6 = ssub.s32 1, %s4
  %s7 = scalar_select 0, %s6, %s4
  $region1: #{_pallas_linear_padded.1} parent=0
    #allocation3 [shape = 'u8[4096]{0}', space=vmem, size = 0x1000, scoped, tag = 'input window, operand 0, single buffered']
    #allocation4 [shape = 's32[1]{0}', space=sflag, size = 0x4, scoped, tag = 'scoped memory for _pallas_linear_padded.1']
    #allocation5 [shape = 's32[1]{0}', space=sflag, size = 0x4, scoped, tag = 'scoped memory for _pallas_linear_padded.1']
    #allocation6 [shape = 'u8[65536]{0}', space=vmem, size = 0x10000, scoped, tag = 'input window, operand 1, single buffered']
    #allocation7 [shape = 's32[1]{0}', space=sflag, size = 0x4, scoped, tag = 'scoped memory for _pallas_linear_padded.1']
    #allocation8 [shape = 'u8[512]{0}', space=vmem, size = 0x400, scoped, tag = 'input window, operand 2, single buffered']
    #allocation9 [shape = 'u8[4096]{0}', space=vmem, size = 0x1000, scoped, tag = 'output window, operand 0, single buffered']
    %8 = vsyncpa [#allocation4], 0
    %9 = vsyncpa [#allocation7], 0
    %10 = vsyncpa [#allocation5], 0
    // Predicated region
    $region2: #{_pallas_linear_padded.1} parent=1 // pred_check
      _
    $region3: #{_pallas_linear_padded.1} parent=1 // pred_check_branch
      %12 = sbr.rel (0) target = $region5
    $region4: #{_pallas_linear_padded.1} parent=1 // pred_region
      %s14 = ssub.s32 128, 128
      %15 = vsyncadd [#allocation4], %s14
      %s17 = sshll.u32 [#allocation3], 4
      %s18 = int_to_ptr.vmem [resolvable:$true] %s17
      %20 = dma.hbm_to_vmem [thread:$0]  %s0, 128, %s18, [#allocation4]
    $region5: #{_pallas_linear_padded.1} parent=1 // pred_fallthru
      _
    // Predicated region
    $region6: #{_pallas_linear_padded.1} parent=1 // pred_check
      _
    $region7: #{_pallas_linear_padded.1} parent=1 // pred_check_branch
      %22 = sbr.rel (0) target = $region9
    $region8: #{_pallas_linear_padded.1} parent=1 // pred_region
      %s24 = ssub.s32 2048, 2048
      %25 = vsyncadd [#allocation7], %s24
      %s26 = sshll.u32 [#allocation6], 4
      %s27 = int_to_ptr.vmem [resolvable:$true] %s26
      %32 = dma.hbm_to_vmem [thread:$0]  %s1, 2048, %s27, [#allocation7], 128, 128, 8
    $region9: #{_pallas_linear_padded.1} parent=1 // pred_fallthru
      _
    // Predicated region
    $region10: #{_pallas_linear_padded.1} parent=1 // pred_check
      _
    $region11: #{_pallas_linear_padded.1} parent=1 // pred_check_branch
      %34 = sbr.rel (0) target = $region13
    $region12: #{_pallas_linear_padded.1} parent=1 // pred_region
      %s36 = ssub.s32 16, 16
      %37 = vsyncadd [#allocation7], %s36
      %s39 = sshll.u32 [#allocation8], 4
      %s40 = int_to_ptr.vmem [resolvable:$true] %s39
      %42 = dma.hbm_to_vmem [thread:$0]  %s2, 16, %s40, [#allocation7]
    $region13: #{_pallas_linear_padded.1} parent=1 // pred_fallthru
      _
    // Predicated region
    $region14: #{_pallas_linear_padded.1} parent=1 // pred_check
      _
    $region15: #{_pallas_linear_padded.1} parent=1 // pred_check_branch
      %44 = sbr.rel (0) target = $region17
    $region16: #{_pallas_linear_padded.1} parent=1 // pred_region
      %45 = dma.done [#allocation4], 128
    $region17: #{_pallas_linear_padded.1} parent=1 // pred_fallthru
      _
    // Predicated region
    $region18: #{_pallas_linear_padded.1} parent=1 // pred_check
      _
    $region19: #{_pallas_linear_padded.1} parent=1 // pred_check_branch
      %47 = sbr.rel (0) target = $region21
    $region20: #{_pallas_linear_padded.1} parent=1 // pred_region
      %48 = dma.done [#allocation7], 2048
    $region21: #{_pallas_linear_padded.1} parent=1 // pred_fallthru
      _
    // Predicated region
    $region22: #{_pallas_linear_padded.1} parent=1 // pred_check
      _
    $region23: #{_pallas_linear_padded.1} parent=1 // pred_check_branch
      %50 = sbr.rel (0) target = $region25
    $region24: #{_pallas_linear_padded.1} parent=1 // pred_region
      %51 = dma.done [#allocation7], 16
    $region25: #{_pallas_linear_padded.1} parent=1 // pred_fallthru
      _
    %p52 = scmp.eq.s32.totalorder 0, 0
    // Predicated region
    $region26: #{_pallas_linear_padded.1} parent=1 // pred_check
      %p53 = pneg %p52
    $region27: #{_pallas_linear_padded.1} parent=1 // pred_check_branch
      %55 = sbr.rel (%p53) target = $region29
    $region28: #{_pallas_linear_padded.1} parent=1 // pred_region
      %v56 = vld [vmem:[#allocation8] sm:$0x1]
      %v58 = vlaneseq
      %v59 = vshrl.u32 %v58, 7
      %v60 = vsub.s32 0, %v59
      %v61 = vrot.slane %v56, %v60
      %63 = vst [vmem:[#allocation2] sm:$0xff] %v61
    $region29: #{_pallas_linear_padded.1} parent=1 // pred_fallthru
      _
    %v64 = vld [vmem:[#allocation2] sm:$0xff]
    %v65 = vld [vmem:[#allocation3] sm:$0xff]
    %v66 = vld [vmem:[#allocation6] sm:$0xff]
    %v67 = vld [vmem:[#allocation6 + $0x8] sm:$0xff]
    %v68 = vld [vmem:[#allocation6 + $0x10] sm:$0xff]
    %v69 = vld [vmem:[#allocation6 + $0x18] sm:$0xff]
    %v70 = vld [vmem:[#allocation6 + $0x20] sm:$0xff]
    %v71 = vld [vmem:[#allocation6 + $0x28] sm:$0xff]
    %v72 = vld [vmem:[#allocation6 + $0x30] sm:$0xff]
    %v73 = vld [vmem:[#allocation6 + $0x38] sm:$0xff]
    %v74 = vld [vmem:[#allocation6 + $0x40] sm:$0xff]
    %v75 = vld [vmem:[#allocation6 + $0x48] sm:$0xff]
    %v76 = vld [vmem:[#allocation6 + $0x50] sm:$0xff]
    %v77 = vld [vmem:[#allocation6 + $0x58] sm:$0xff]
    %v78 = vld [vmem:[#allocation6 + $0x60] sm:$0xff]
    %v79 = vld [vmem:[#allocation6 + $0x68] sm:$0xff]
    %v80 = vld [vmem:[#allocation6 + $0x70] sm:$0xff]
    %v81 = vld [vmem:[#allocation6 + $0x78] sm:$0xff]
    %82 = vmatprep.subr.mxu0 0.0
    %83 = vmatpush1.msra.mxu0 %v66
    %84 = vmatprep.subr.mxu0 0.0
    %85 = vmatpush1.msra.mxu0 %v67
    %86 = vmatprep.subr.mxu0 0.0
    %87 = vmatpush1.msra.mxu0 %v68
    %88 = vmatprep.subr.mxu0 0.0
    %89 = vmatpush1.msra.mxu0 %v69
    %90 = vmatprep.subr.mxu0 0.0
    %91 = vmatpush1.msra.mxu0 %v70
    %92 = vmatprep.subr.mxu0 0.0
    %93 = vmatpush1.msra.mxu0 %v71
    %94 = vmatprep.subr.mxu0 0.0
    %95 = vmatpush1.msra.mxu0 %v72
    %96 = vmatprep.subr.mxu0 0.0
    %97 = vmatpush1.msra.mxu0 %v73
    %98 = vmatprep.subr.mxu0 0.0
    %99 = vmatpush1.msra.mxu0 %v74
    %100 = vmatprep.subr.mxu0 0.0
    %101 = vmatpush1.msra.mxu0 %v75
    %102 = vmatprep.subr.mxu0 0.0
    %103 = vmatpush1.msra.mxu0 %v76
    %104 = vmatprep.subr.mxu0 0.0
    %105 = vmatpush1.msra.mxu0 %v77
    %106 = vmatprep.subr.mxu0 0.0
    %107 = vmatpush1.msra.mxu0 %v78
    %108 = vmatprep.subr.mxu0 0.0
    %109 = vmatpush1.msra.mxu0 %v79
    %110 = vmatprep.subr.mxu0 0.0
    %111 = vmatpush1.msra.mxu0 %v80
    %112 = vmatprep.subr.mxu0 0.0
    %113 = vmatpush1.msra.mxu0 %v81
    %114 = vmatprep.subr.mxu0 0.0
    %115 = vmatpush1.msra.mxu0 0.0
    %116 = vmatprep.subr.mxu0 0.0
    %117 = vmatpush1.msra.mxu0 0.0
    %118 = vmatprep.subr.mxu0 0.0
    %119 = vmatpush1.msra.mxu0 0.0
    %120 = vmatprep.subr.mxu0 0.0
    %121 = vmatpush1.msra.mxu0 0.0
    %122 = vmatprep.subr.mxu0 0.0
    %123 = vmatpush1.msra.mxu0 0.0
    %124 = vmatprep.subr.mxu0 0.0
    %125 = vmatpush1.msra.mxu0 0.0
    %126 = vmatprep.subr.mxu0 0.0
    %127 = vmatpush1.msra.mxu0 0.0
    %128 = vmatprep.subr.mxu0 0.0
    %129 = vmatpush1.msra.mxu0 0.0
    %130 = vmatprep.subr.mxu0 0.0
    %131 = vmatpush1.msra.mxu0 0.0
    %132 = vmatprep.subr.mxu0 0.0
    %133 = vmatpush1.msra.mxu0 0.0
    %134 = vmatprep.subr.mxu0 0.0
    %135 = vmatpush1.msra.mxu0 0.0
    %136 = vmatprep.subr.mxu0 0.0
    %137 = vmatpush1.msra.mxu0 0.0
    %138 = vmatprep.subr.mxu0 0.0
    %139 = vmatpush1.msra.mxu0 0.0
    %140 = vmatprep.subr.mxu0 0.0
    %141 = vmatpush1.msra.mxu0 0.0
    %142 = vmatprep.subr.mxu0 0.0
    %143 = vmatpush1.msra.mxu0 0.0
    %144 = vmatprep.subr.mxu0 0.0
    %145 = vmatpush1.msra.mxu0 0.0
    %146 = vmatprep.mubr.f32.mxu0 0.0
    %147 = vmatmul.mubr.f32.gmra.mrb[0].mxu0 %v65
    %v148 = vpop.f32.mrb[0].mxu0
    %v149 = vadd.f32 0.0, %v148
    %v150 = vpop.f32.mrb[0].mxu0
    %151 = vdwg.mxu0
    %v152 = vadd.f32 %v64, %v149
    %153 = vst [vmem:[#allocation2] sm:$0xff] %v152
    // Predicated region
    $region30: #{_pallas_linear_padded.1} parent=1 // pred_check
      %p154 = pneg %p52
    $region31: #{_pallas_linear_padded.1} parent=1 // pred_check_branch
      %156 = sbr.rel (%p154) target = $region33
    $region32: #{_pallas_linear_padded.1} parent=1 // pred_region
      %v157 = vld [vmem:[#allocation2] sm:$0xff]
      %158 = vst [vmem:[#allocation9] sm:$0xff] %v157
    $region33: #{_pallas_linear_padded.1} parent=1 // pred_fallthru
      _
    // Predicated region
    $region34: #{_pallas_linear_padded.1} parent=1 // pred_check
      _
    $region35: #{_pallas_linear_padded.1} parent=1 // pred_check_branch
      %160 = sbr.rel (0) target = $region37
    $region36: #{_pallas_linear_padded.1} parent=1 // pred_region
      %s162 = ssub.s32 128, 128
      %163 = vsyncadd [#allocation5], %s162
      %s165 = sshll.u32 [#allocation9], 4
      %s166 = int_to_ptr.vmem [resolvable:$true] %s165
      %168 = dma.vmem_to_hbm [thread:$0]  %s166, 128, %s3, [#allocation5]
    $region37: #{_pallas_linear_padded.1} parent=1 // pred_fallthru
      _
    // Predicated region
    $region38: #{_pallas_linear_padded.1} parent=1 // pred_check
      _
    $region39: #{_pallas_linear_padded.1} parent=1 // pred_check_branch
      %170 = sbr.rel (0) target = $region41
    $region40: #{_pallas_linear_padded.1} parent=1 // pred_region
      %171 = dma.done [#allocation5], 128
    $region41: #{_pallas_linear_padded.1} parent=1 // pred_fallthru
      _
    %172 = vsyncpa [#allocation4], 1
    %173 = vsyncpa [#allocation7], 1
    %174 = vsyncpa [#allocation5], 1

</llo_original>
